<compile_context>
chip_gen: v6e
topology: v6e:2x2x1
jax: 0.10.0
libtpu: 0.0.40
codegen_flags: <defaults>
</compile_context>

<pallas_src>
import functools

import jax
import jax.numpy as jnp
from jax.experimental import pallas as pl
from jax.experimental.pallas import tpu as pltpu


def _ce_kernel(x_ref, t_ref, o_ref, *, inv_n: float):
    x = x_ref[...]                      # (N, C) f32 logits, class axis on lanes
    t = t_ref[...]                      # (N, 1) int32 class indices

    # Stable per-row logsumexp: 1 exp + 1 log per element/row on the EUP.
    m = jnp.max(x, axis=-1, keepdims=True)
    lse = jnp.log(jnp.sum(jnp.exp(x - m), axis=-1, keepdims=True)) + m     # (N, 1)

    # x[i, target[i]] without a gather: one-hot select via lane iota (VPU only).
    lane = jax.lax.broadcasted_iota(jnp.int32, x.shape, 1)
    picked = jnp.sum(jnp.where(lane == t, x, 0.0), axis=-1, keepdims=True)  # (N, 1)

    per_row = lse - picked                                                 # (N, 1)
    # Mean with a compile-time 1/N constant; scalar result goes out via SMEM.
    o_ref[0, 0] = jnp.sum(per_row) * inv_n


def cross_entropy_loss(logits, target):
    """Equivalent of CrossEntropyLoss_()(input, target) -> scalar mean loss (f32).

    logits: (N, C) float logits.  target: (N,) integer class indices.
    """
    assert logits.ndim == 2 and target.shape == (logits.shape[0],)
    n, c = logits.shape
    x = logits.astype(jnp.float32)
    t = target.astype(jnp.int32).reshape(n, 1)

    out = pl.pallas_call(
        functools.partial(_ce_kernel, inv_n=1.0 / n),
        out_shape=jax.ShapeDtypeStruct((1, 1), jnp.float32),
        in_specs=[
            pl.BlockSpec((n, c), lambda: (0, 0)),   # full-array VMEM block
            pl.BlockSpec((n, 1), lambda: (0, 0)),   # targets as (N,1) int32
        ],
        out_specs=pl.BlockSpec(memory_space=pltpu.MemorySpace.SMEM),
    )(x, t)
    return out[0, 0]


if __name__ == "__main__":
    key = jax.random.PRNGKey(0)
    k1, k2 = jax.random.split(key)

    # Small but lane-dense CE problem: 16 samples, 128 classes.
    n, c = 16, 128
    x = jax.random.normal(k1, (n, c), dtype=jnp.float32)
    target = jax.random.randint(k2, (n,), 0, c, dtype=jnp.int32)

    loss = cross_entropy_loss(x, target)
    loss = jax.block_until_ready(loss)

    # Pure-JAX reference (matches torch.nn.CrossEntropyLoss, reduction='mean').
    logsm = jax.nn.log_softmax(x, axis=-1)
    ref = -jnp.mean(logsm[jnp.arange(n), target])
    assert jnp.allclose(loss, ref, atol=1e-5, rtol=1e-5), (loss, ref)

    print("KERNEL_OK")
</pallas_src>

<mosaic_0001>
module attributes {stable_mosaic.version = 11 : i64} {
  func.func @_ce_kernel(%arg0: memref<16x128xf32, #tpu.memory_space<vmem>>, %arg1: memref<16x1xi32, #tpu.memory_space<vmem>>, %arg2: memref<1x1xf32, #tpu.memory_space<smem>>) attributes {dimension_semantics = [], scalar_prefetch = 0 : i64, scratch_operands = 0 : i64, tpu.core_type = #tpu.core_type<tc>} {
    %c0 = arith.constant 0 : index
    %c0_0 = arith.constant 0 : index
    %0 = vector.load %arg0[%c0, %c0_0] : memref<16x128xf32, #tpu.memory_space<vmem>>, vector<16x128xf32>
    %c0_1 = arith.constant 0 : index
    %c0_2 = arith.constant 0 : index
    %1 = vector.load %arg1[%c0_1, %c0_2] : memref<16x1xi32, #tpu.memory_space<vmem>>, vector<16x1xi32>
    %cst = arith.constant dense<0xFF800000> : vector<16xf32>
    %2 = vector.multi_reduction <maximumf>, %0, %cst [1] : vector<16x128xf32> to vector<16xf32>
    %3 = vector.shape_cast %2 : vector<16xf32> to vector<16x1xf32>
    %4 = vector.broadcast %3 : vector<16x1xf32> to vector<16x128xf32>
    %5 = arith.subf %0, %4 : vector<16x128xf32>
    %6 = math.exp %5 : vector<16x128xf32>
    %cst_3 = arith.constant dense<0.000000e+00> : vector<16xf32>
    %7 = vector.multi_reduction <add>, %6, %cst_3 [1] : vector<16x128xf32> to vector<16xf32>
    %8 = vector.shape_cast %7 : vector<16xf32> to vector<16x1xf32>
    %9 = math.log %8 : vector<16x1xf32>
    %10 = arith.addf %9, %3 : vector<16x1xf32>
    %11 = tpu.iota {dimensions = array<i32: 1>} : vector<16x128xi32>
    %12 = vector.broadcast %1 : vector<16x1xi32> to vector<16x128xi32>
    %13 = arith.cmpi eq, %11, %12 : vector<16x128xi32>
    %cst_4 = arith.constant 0.000000e+00 : f32
    %14 = vector.broadcast %cst_4 : f32 to vector<16x128xf32>
    %15 = arith.select %13, %0, %14 : vector<16x128xi1>, vector<16x128xf32>
    %cst_5 = arith.constant dense<0.000000e+00> : vector<16xf32>
    %16 = vector.multi_reduction <add>, %15, %cst_5 [1] : vector<16x128xf32> to vector<16xf32>
    %17 = vector.shape_cast %16 : vector<16xf32> to vector<16x1xf32>
    %18 = arith.subf %10, %17 : vector<16x1xf32>
    %19 = vector.shape_cast %18 : vector<16x1xf32> to vector<1x16x1xf32>
    %cst_6 = arith.constant dense<0.000000e+00> : vector<1xf32>
    %20 = vector.multi_reduction <add>, %19, %cst_6 [1, 2] : vector<1x16x1xf32> to vector<1xf32>
    %21 = vector.shape_cast %20 : vector<1xf32> to vector<1x1x1xf32>
    %22 = vector.extract %21[0, 0, 0] : f32 from vector<1x1x1xf32>
    %cst_7 = arith.constant 6.250000e-02 : f32
    %23 = arith.mulf %22, %cst_7 : f32
    %c0_8 = arith.constant 0 : index
    %c0_9 = arith.constant 0 : index
    %24 = memref.load %arg2[%c0_8, %c0_9] : memref<1x1xf32, #tpu.memory_space<smem>>
    memref.store %23, %arg2[%c0_8, %c0_9] : memref<1x1xf32, #tpu.memory_space<smem>>
    return
  }
}

</mosaic_0001>

<llo_original>
// kernel: tpu_custom_call.1
$region0: #{tpu_custom_call.1}
  #allocation0 [shape = 'u32[]', space=smem, size = 0x4, offset = 0x4, fixed_abs, tag = 'smem constant byte address 0x4 - core index']
  #allocation1 [shape = 'u32[144,128]{1,0:T(1,128)}', space=vmem, size = 0x12000, scoped, tag = 'internal scratch']
  %s0 = inlined_call_operand.vmem [shape: f32[16,128], index: 0, kind: input, shape index: {}]
  %s1 = inlined_call_operand.vmem [shape: s32[16,1], index: 1, kind: input, shape index: {}]
  %s2 = inlined_call_operand.hbm [shape: f32[1,1], index: 2, kind: output, shape index: {}]
  %s3 = sld [smem:[#allocation0]]
  $region18: #{tpu_custom_call.1} parent=0
    _
  %s5 = ssub.s32 1, %s3
  %s6 = scalar_select 0, %s5, %s3
  $region1: #{tpu_custom_call.1} parent=0
    #allocation2 [shape = 'u8[512]{0}', space=smem, size = 0x200, scoped, tag = 'output window, operand 0, single buffered']
    #allocation3 [shape = 's32[1]{0}', space=sflag, size = 0x4, scoped, tag = 'scoped memory for tpu_custom_call.1']
    %7 = vsyncpa [#allocation3], 0
    // Predicated region
    $region2: #{tpu_custom_call.1} parent=1 // pred_check
      _
    $region3: #{tpu_custom_call.1} parent=1 // pred_check_branch
      %9 = sbr.rel (0) target = $region5
    $region4: #{tpu_custom_call.1} parent=1 // pred_region
      _
    $region5: #{tpu_custom_call.1} parent=1 // pred_fallthru
      _
    // Predicated region
    $region6: #{tpu_custom_call.1} parent=1 // pred_check
      _
    $region7: #{tpu_custom_call.1} parent=1 // pred_check_branch
      %11 = sbr.rel (0) target = $region9
    $region8: #{tpu_custom_call.1} parent=1 // pred_region
      _
    $region9: #{tpu_custom_call.1} parent=1 // pred_fallthru
      _
    %v12 = vld [vmem:[%s0] sm:$0xff]
    %v13 = vld [vmem:[%s0 + $0x8] sm:$0xff]
    %v14 = vld [vmem:[%s1] sm:$0xff]
    %v15 = vld [vmem:[%s1 + $0x8] sm:$0xff]
    %16 = vmax.xlane.f32.xlu0 %v12
    %v17 = vpop.xlane.xlu0 %16
    %18 = vmax.xlane.f32.xlu0 %v13
    %v19 = vpop.xlane.xlu0 %18
    %v20 = vsub.f32 %v12, %v17
    %v21 = vsub.f32 %v13, %v19
    %v22 = vmul.f32 %v20, 1.442695
    %v23 = vpow.pop %v22
    %v24 = vmul.f32 %v21, 1.442695
    %v25 = vpow.pop %v24
    %26 = vadd.xlane.f32.xlu0 %v23
    %v27 = vpop.xlane.xlu0 %26
    %28 = vadd.xlane.f32.xlu0 %v25
    %v29 = vpop.xlane.xlu0 %28
    %v30 = vlog2.pop %v27
    %v31 = vmul.f32 %v30, 0.6931472
    %v32 = vlog2.pop %v29
    %v33 = vmul.f32 %v32, 0.6931472
    %v34 = vadd.f32 %v31, %v17
    %v35 = vadd.f32 %v33, %v19
    %v36 = vlaneseq
    %v37 = vand.u32 %v36, 127
    %38 = vset.pattern.permute.xlu0 0
    %39 = vperm.xlu0 %38, %v14
    %v40 = vpop.permute.xlu0 %39
    %41 = vset.pattern.permute.xlu0 0
    %42 = vperm.xlu0 %41, %v15
    %v43 = vpop.permute.xlu0 %42
    %vm44 = vcmp.eq.s32.totalorder %v37, %v40
    %vm45 = vcmp.eq.s32.totalorder %v37, %v43
    %v46 = vsel %vm44, %v12, 0.0
    %v47 = vsel %vm45, %v13, 0.0
    %48 = vadd.xlane.f32.xlu0 %v46
    %v49 = vpop.xlane.xlu0 %48
    %50 = vadd.xlane.f32.xlu0 %v47
    %v51 = vpop.xlane.xlu0 %50
    %v52 = vsub.f32 %v34, %v49
    %v53 = vsub.f32 %v35, %v51
    %vm54 = vcmask 7168
    %v55 = vsel %vm54, %v52, 0.0
    %v56 = vsel %vm54, %v53, 0.0
    %v57 = vadd.f32 %v55, %v56
    %58 = vadd.xlane.f32.xlu0 %v57
    %v59 = vpop.xlane.xlu0 %58
    %v60 = vrot.slane %v59, 4
    %v61 = vadd.f32 %v59, %v60
    %v62 = vrot.slane %v61, 2
    %v63 = vadd.f32 %v61, %v62
    %v64 = vrot.slane %v63, 1
    %v65 = vadd.f32 %v63, %v64
    %s66 = vtos %v65
    %s67 = smul.f32 %s66, 0.0625
    %s68 = scalar_lea.smem [#allocation2], 0
    %69 = sst [smem:[%s68]] %s67
    // Predicated region
    $region10: #{tpu_custom_call.1} parent=1 // pred_check
      _
    $region11: #{tpu_custom_call.1} parent=1 // pred_check_branch
      %71 = sbr.rel (0) target = $region13
    $region12: #{tpu_custom_call.1} parent=1 // pred_region
      %s73 = ssub.s32 16, 16
      %74 = vsyncadd [#allocation3], %s73
      %77 = dma.smem_to_hbm [#allocation2], 16, %s2, [#allocation3]
    $region13: #{tpu_custom_call.1} parent=1 // pred_fallthru
      _
    // Predicated region
    $region14: #{tpu_custom_call.1} parent=1 // pred_check
      _
    $region15: #{tpu_custom_call.1} parent=1 // pred_check_branch
      %79 = sbr.rel (0) target = $region17
    $region16: #{tpu_custom_call.1} parent=1 // pred_region
      %80 = dma.done [#allocation3], 16
    $region17: #{tpu_custom_call.1} parent=1 // pred_fallthru
      _
    %81 = sfence
    %82 = vsyncpa [#allocation3], 1

</llo_original>
